<compile_context>
chip_gen: v6e
topology: v6e:2x2x1
jax: 0.10.0
libtpu: 0.0.40
codegen_flags: <defaults>
</compile_context>

<pallas_src>
import functools

import jax
import jax.numpy as jnp
from jax.experimental import pallas as pl
from jax.experimental.pallas import tpu as pltpu


def mlp_kernel(x_ref, w1_ref, b1_ref, w2_ref, b2_ref, w3_ref, b3_ref, o_ref):
    """out = relu(relu(x@W1+b1)@W2+b2)@W3+b3 for one (TB, D) batch tile.

    Matmul operands run at the weights' dtype (f32 or bf16); accumulation,
    bias adds and ReLUs stay in f32.  x is cast in-kernel so only f32 x ever
    crosses HBM.
    """
    cdt = w1_ref.dtype
    x = x_ref[...].astype(cdt)                       # free VPU cast
    h1 = jnp.dot(x, w1_ref[...], preferred_element_type=jnp.float32)
    h1 = jnp.maximum(h1 + b1_ref[...], 0.0).astype(cdt)
    h2 = jnp.dot(h1, w2_ref[...], preferred_element_type=jnp.float32)
    h2 = jnp.maximum(h2 + b2_ref[...], 0.0).astype(cdt)
    o_ref[...] = (
        jnp.dot(h2, w3_ref[...], preferred_element_type=jnp.float32) + b3_ref[...]
    )


def _round_up(x, m):
    return ((x + m - 1) // m) * m


def _cdiv(a, b):
    return (a + b - 1) // b


def _pick_batch_tiling(batch, block_b):
    """Return (tile_rows, num_steps).

    tile_rows is a multiple of 16 (satisfies the (8,128) rule for f32 and the
    16-row sublane packing for bf16); num_steps is forced even when > 1 so the
    parallel batch axis splits evenly across v7x's two TensorCores.
    """
    block_b = _round_up(max(int(block_b), 16), 16)
    if batch <= block_b:
        return _round_up(batch, 16), 1
    steps = _cdiv(batch, block_b)
    if steps % 2:
        steps += 1  # balance the two TensorCores on v7x
    return _round_up(_cdiv(batch, steps), 16), steps


@functools.partial(jax.jit, static_argnames=("block_b", "compute_dtype"))
def neural_network_forward(x, params, *, block_b=2048, compute_dtype=jnp.float32):
    """x: (B, input_dim) float32.  params: dict of w1,b1,w2,b2,w3,b3 (f32).

    compute_dtype=bf16 halves matmul-operand DMA bytes and is MXU-native on
    v5e, v6e and v7x; elementwise math stays f32 on all of them.
    """
    B, D = x.shape
    w1, b1 = params["w1"], params["b1"]
    w2, b2 = params["w2"], params["b2"]
    w3, b3 = params["w3"], params["b3"]
    out_dim = w3.shape[1]

    tb, steps = _pick_batch_tiling(B, block_b)
    bp = tb * steps
    if bp != B:
        x = jnp.pad(x, ((0, bp - B), (0, 0)))

    # Weight casts are tiny and one-time; x is cast inside the kernel instead.
    w1d = w1.astype(compute_dtype)
    w2d = w2.astype(compute_dtype)
    w3d = w3.astype(compute_dtype)

    # constant index_map => fetched once, stays VMEM-resident across grid steps
    const = lambda arr: pl.BlockSpec(arr.shape, lambda i: (0,) * arr.ndim)

    out = pl.pallas_call(
        mlp_kernel,
        out_shape=jax.ShapeDtypeStruct((bp, out_dim), jnp.float32),
        grid=(steps,),
        in_specs=[
            pl.BlockSpec((tb, D), lambda i: (i, 0)),   # streamed f32 batch tile
            const(w1d), const(b1),
            const(w2d), const(b2),
            const(w3d), const(b3),
        ],
        out_specs=pl.BlockSpec((tb, out_dim), lambda i: (i, 0)),
        compiler_params=pltpu.CompilerParams(
            dimension_semantics=("parallel",),  # shard batch tiles on v7x's 2 TCs
        ),
    )(x, w1d, b1, w2d, b2, w3d, b3)

    if bp != B:
        out = out[:B]            # only the cheap 12 B/row row-slice, no lane slice
    return out


def reference_forward(x, params):
    """Pure-JAX f32 reference."""
    w1, b1 = params["w1"], params["b1"]
    w2, b2 = params["w2"], params["b2"]
    w3, b3 = params["w3"], params["b3"]
    h1 = jnp.maximum(jnp.dot(x, w1, preferred_element_type=jnp.float32) + b1, 0.0)
    h2 = jnp.maximum(jnp.dot(h1, w2, preferred_element_type=jnp.float32) + b2, 0.0)
    return jnp.dot(h2, w3, preferred_element_type=jnp.float32) + b3


def init_params(key, input_dim):
    """Deterministic init mimicking nn.Linear's U(-1/sqrt(fan_in), 1/sqrt(fan_in))."""
    dims = [(input_dim, 256), (256, 128), (128, 3)]
    params = {}
    for i, (fan_in, fan_out) in enumerate(dims, start=1):
        key, kw, kb = jax.random.split(key, 3)
        bound = 1.0 / jnp.sqrt(jnp.float32(fan_in))
        # stored as (in, out) == transpose of PyTorch's (out, in) weight
        params[f"w{i}"] = jax.random.uniform(
            kw, (fan_in, fan_out), jnp.float32, -bound, bound)
        params[f"b{i}"] = jax.random.uniform(
            kb, (1, fan_out), jnp.float32, -bound, bound)
    return params


if __name__ == "__main__":
    key = jax.random.PRNGKey(0)
    k_x, k_x2, k_p = jax.random.split(key, 3)

    input_dim = 32
    params = init_params(k_p, input_dim)

    # small batch (single grid step), strict f32 check
    x_small = jax.random.normal(k_x, (8, input_dim), jnp.float32)
    out = jax.block_until_ready(neural_network_forward(x_small, params))
    ref = reference_forward(x_small, params)
    assert out.shape == (8, 3)
    assert jnp.allclose(out, ref, atol=1e-5, rtol=1e-5)

    # larger, non-multiple batch: exercises the multi-step grid (forced even for
    # v7x balance), batch padding/slicing, and the narrow (B, 3) output path
    x_big = jax.random.normal(k_x2, (300, input_dim), jnp.float32)
    out_big = jax.block_until_ready(
        neural_network_forward(x_big, params, block_b=128))
    ref_big = reference_forward(x_big, params)
    assert out_big.shape == (300, 3)
    assert jnp.allclose(out_big, ref_big, atol=1e-5, rtol=1e-5)

    # bf16 matmul-operand path (MXU-native on v5e/v6e/v7x); loose check vs f32 ref
    out_bf16 = jax.block_until_ready(
        neural_network_forward(x_big, params, block_b=128,
                               compute_dtype=jnp.bfloat16))
    assert out_bf16.shape == (300, 3)
    assert jnp.allclose(out_bf16, ref_big, atol=2e-1, rtol=5e-2)

    print("KERNEL_OK")
</pallas_src>

<mosaic_0001>
module attributes {stable_mosaic.version = 11 : i64} {
  func.func @mlp_kernel(%arg0: i32, %arg1: memref<16x32xf32, #tpu.memory_space<vmem>>, %arg2: memref<32x256xf32, #tpu.memory_space<vmem>>, %arg3: memref<1x256xf32, #tpu.memory_space<vmem>>, %arg4: memref<256x128xf32, #tpu.memory_space<vmem>>, %arg5: memref<1x128xf32, #tpu.memory_space<vmem>>, %arg6: memref<128x3xf32, #tpu.memory_space<vmem>>, %arg7: memref<1x3xf32, #tpu.memory_space<vmem>>, %arg8: memref<16x3xf32, #tpu.memory_space<vmem>>) attributes {dimension_semantics = [#tpu.dimension_semantics<parallel>], iteration_bounds = array<i64: 1>, scalar_prefetch = 0 : i64, scratch_operands = 0 : i64, tpu.core_type = #tpu.core_type<tc>, window_params = [{transform_indices = @transform_0, window_bounds = array<i64: 16, 32>}, {pipeline_mode = #tpu.pipeline_mode<synchronous>, transform_indices = @transform_1, window_bounds = array<i64: 32, 256>}, {pipeline_mode = #tpu.pipeline_mode<synchronous>, transform_indices = @transform_2, window_bounds = array<i64: 1, 256>}, {pipeline_mode = #tpu.pipeline_mode<synchronous>, transform_indices = @transform_3, window_bounds = array<i64: 256, 128>}, {pipeline_mode = #tpu.pipeline_mode<synchronous>, transform_indices = @transform_4, window_bounds = array<i64: 1, 128>}, {pipeline_mode = #tpu.pipeline_mode<synchronous>, transform_indices = @transform_5, window_bounds = array<i64: 128, 3>}, {pipeline_mode = #tpu.pipeline_mode<synchronous>, transform_indices = @transform_6, window_bounds = array<i64: 1, 3>}, {transform_indices = @transform_7, window_bounds = array<i64: 16, 3>}]} {
    %c0 = arith.constant 0 : index
    %c0_0 = arith.constant 0 : index
    %0 = vector.load %arg1[%c0, %c0_0] : memref<16x32xf32, #tpu.memory_space<vmem>>, vector<16x32xf32>
    %c0_1 = arith.constant 0 : index
    %c0_2 = arith.constant 0 : index
    %1 = vector.load %arg2[%c0_1, %c0_2] : memref<32x256xf32, #tpu.memory_space<vmem>>, vector<32x256xf32>
    %cst = arith.constant dense<0.000000e+00> : vector<16x256xf32>
    %2 = tpu.matmul %0, %1, %cst {dimension_numbers = #tpu.dot_dimension_numbers<[1], [0], [0], [1], [0, 0, 1, 1], [], []>} : vector<16x32xf32>, vector<32x256xf32>, vector<16x256xf32> -> vector<16x256xf32>
    %c0_3 = arith.constant 0 : index
    %c0_4 = arith.constant 0 : index
    %3 = vector.load %arg3[%c0_3, %c0_4] : memref<1x256xf32, #tpu.memory_space<vmem>>, vector<1x256xf32>
    %4 = vector.broadcast %3 : vector<1x256xf32> to vector<16x256xf32>
    %5 = arith.addf %2, %4 : vector<16x256xf32>
    %cst_5 = arith.constant 0.000000e+00 : f32
    %6 = vector.broadcast %cst_5 : f32 to vector<16x256xf32>
    %7 = arith.maximumf %5, %6 : vector<16x256xf32>
    %c0_6 = arith.constant 0 : index
    %c0_7 = arith.constant 0 : index
    %8 = vector.load %arg4[%c0_6, %c0_7] : memref<256x128xf32, #tpu.memory_space<vmem>>, vector<256x128xf32>
    %cst_8 = arith.constant dense<0.000000e+00> : vector<16x128xf32>
    %9 = tpu.matmul %7, %8, %cst_8 {dimension_numbers = #tpu.dot_dimension_numbers<[1], [0], [0], [1], [0, 0, 1, 1], [], []>} : vector<16x256xf32>, vector<256x128xf32>, vector<16x128xf32> -> vector<16x128xf32>
    %c0_9 = arith.constant 0 : index
    %c0_10 = arith.constant 0 : index
    %10 = vector.load %arg5[%c0_9, %c0_10] : memref<1x128xf32, #tpu.memory_space<vmem>>, vector<1x128xf32>
    %11 = vector.broadcast %10 : vector<1x128xf32> to vector<16x128xf32>
    %12 = arith.addf %9, %11 : vector<16x128xf32>
    %cst_11 = arith.constant 0.000000e+00 : f32
    %13 = vector.broadcast %cst_11 : f32 to vector<16x128xf32>
    %14 = arith.maximumf %12, %13 : vector<16x128xf32>
    %c0_12 = arith.constant 0 : index
    %c0_13 = arith.constant 0 : index
    %15 = vector.load %arg6[%c0_12, %c0_13] : memref<128x3xf32, #tpu.memory_space<vmem>>, vector<128x3xf32>
    %cst_14 = arith.constant dense<0.000000e+00> : vector<16x3xf32>
    %16 = tpu.matmul %14, %15, %cst_14 {dimension_numbers = #tpu.dot_dimension_numbers<[1], [0], [0], [1], [0, 0, 1, 1], [], []>} : vector<16x128xf32>, vector<128x3xf32>, vector<16x3xf32> -> vector<16x3xf32>
    %c0_15 = arith.constant 0 : index
    %c0_16 = arith.constant 0 : index
    %17 = vector.load %arg7[%c0_15, %c0_16] : memref<1x3xf32, #tpu.memory_space<vmem>>, vector<1x3xf32>
    %18 = vector.broadcast %17 : vector<1x3xf32> to vector<16x3xf32>
    %19 = arith.addf %16, %18 : vector<16x3xf32>
    %c0_17 = arith.constant 0 : index
    %c0_18 = arith.constant 0 : index
    %20 = vector.load %arg8[%c0_17, %c0_18] : memref<16x3xf32, #tpu.memory_space<vmem>>, vector<16x3xf32>
    tpu.vector_store %arg8[%c0_17, %c0_18], %19 {strides = array<i32>} : memref<16x3xf32, #tpu.memory_space<vmem>>, vector<16x3xf32>,
    return
  }
  func.func @transform_0(%arg0: i32) -> (i32, i32) {
    %c0_i32 = arith.constant 0 : i32
    %c0_i32_0 = arith.constant 0 : i32
    return %arg0, %c0_i32 : i32, i32
  }
  func.func @transform_1(%arg0: i32) -> (i32, i32) {
    %c0_i32 = arith.constant 0 : i32
    %c0_i32_0 = arith.constant 0 : i32
    %c0_i32_1 = arith.constant 0 : i32
    return %c0_i32, %c0_i32_0 : i32, i32
  }
  func.func @transform_2(%arg0: i32) -> (i32, i32) {
    %c0_i32 = arith.constant 0 : i32
    %c0_i32_0 = arith.constant 0 : i32
    %c0_i32_1 = arith.constant 0 : i32
    return %c0_i32, %c0_i32_0 : i32, i32
  }
  func.func @transform_3(%arg0: i32) -> (i32, i32) {
    %c0_i32 = arith.constant 0 : i32
    %c0_i32_0 = arith.constant 0 : i32
    %c0_i32_1 = arith.constant 0 : i32
    return %c0_i32, %c0_i32_0 : i32, i32
  }
  func.func @transform_4(%arg0: i32) -> (i32, i32) {
    %c0_i32 = arith.constant 0 : i32
    %c0_i32_0 = arith.constant 0 : i32
    %c0_i32_1 = arith.constant 0 : i32
    return %c0_i32, %c0_i32_0 : i32, i32
  }
  func.func @transform_5(%arg0: i32) -> (i32, i32) {
    %c0_i32 = arith.constant 0 : i32
    %c0_i32_0 = arith.constant 0 : i32
    %c0_i32_1 = arith.constant 0 : i32
    return %c0_i32, %c0_i32_0 : i32, i32
  }
  func.func @transform_6(%arg0: i32) -> (i32, i32) {
    %c0_i32 = arith.constant 0 : i32
    %c0_i32_0 = arith.constant 0 : i32
    %c0_i32_1 = arith.constant 0 : i32
    return %c0_i32, %c0_i32_0 : i32, i32
  }
  func.func @transform_7(%arg0: i32) -> (i32, i32) {
    %c0_i32 = arith.constant 0 : i32
    %c0_i32_0 = arith.constant 0 : i32
    return %arg0, %c0_i32 : i32, i32
  }
}

</mosaic_0001>

<llo_original>
// kernel: neural_network_forward.1
$region0: #{neural_network_forward.1}
  #allocation0 [shape = 'u32[]', space=smem, size = 0x4, offset = 0x4, fixed_abs, tag = 'smem constant byte address 0x4 - core index']
  #allocation1 [shape = 'u32[144,128]{1,0:T(1,128)}', space=vmem, size = 0x12000, scoped, tag = 'internal scratch']
  %s0 = inlined_call_operand.vmem [shape: f32[16,32], index: 0, kind: input, shape index: {}]
  %s1 = inlined_call_operand.vmem [shape: f32[32,256], index: 1, kind: input, shape index: {}]
  %s2 = inlined_call_operand.vmem [shape: f32[1,256], index: 2, kind: input, shape index: {}]
  %s3 = inlined_call_operand.hbm [shape: f32[256,128], index: 3, kind: input, shape index: {}]
  %s4 = inlined_call_operand.vmem [shape: f32[1,128], index: 4, kind: input, shape index: {}]
  %s5 = inlined_call_operand.vmem [shape: f32[128,3], index: 5, kind: input, shape index: {}]
  %s6 = inlined_call_operand.vmem [shape: f32[1,3], index: 6, kind: input, shape index: {}]
  %s7 = inlined_call_operand.vmem [shape: f32[16,3], index: 7, kind: output, shape index: {}]
  %s8 = sld [smem:[#allocation0]]
  $region42: #{neural_network_forward.1} parent=0
    _
  %s10 = ssub.s32 1, %s8
  %s11 = scalar_select 0, %s10, %s8
  $region1: #{neural_network_forward.1} parent=0
    #allocation2 [shape = 'u8[131072]{0}', space=vmem, size = 0x20000, scoped, tag = 'input window, operand 3, single buffered']
    #allocation3 [shape = 's32[1]{0}', space=sflag, size = 0x4, scoped, tag = 'scoped memory for neural_network_forward.1']
    %12 = vsyncpa [#allocation3], 0
    // Predicated region
    $region2: #{neural_network_forward.1} parent=1 // pred_check
      _
    $region3: #{neural_network_forward.1} parent=1 // pred_check_branch
      %14 = sbr.rel (0) target = $region5
    $region4: #{neural_network_forward.1} parent=1 // pred_region
      _
    $region5: #{neural_network_forward.1} parent=1 // pred_fallthru
      _
    // Predicated region
    $region6: #{neural_network_forward.1} parent=1 // pred_check
      _
    $region7: #{neural_network_forward.1} parent=1 // pred_check_branch
      %16 = sbr.rel (0) target = $region9
    $region8: #{neural_network_forward.1} parent=1 // pred_region
      _
    $region9: #{neural_network_forward.1} parent=1 // pred_fallthru
      _
    // Predicated region
    $region10: #{neural_network_forward.1} parent=1 // pred_check
      _
    $region11: #{neural_network_forward.1} parent=1 // pred_check_branch
      %18 = sbr.rel (0) target = $region13
    $region12: #{neural_network_forward.1} parent=1 // pred_region
      _
    $region13: #{neural_network_forward.1} parent=1 // pred_fallthru
      _
    // Predicated region
    $region14: #{neural_network_forward.1} parent=1 // pred_check
      _
    $region15: #{neural_network_forward.1} parent=1 // pred_check_branch
      %20 = sbr.rel (0) target = $region17
    $region16: #{neural_network_forward.1} parent=1 // pred_region
      %s22 = ssub.s32 4096, 4096
      %23 = vsyncadd [#allocation3], %s22
      %s24 = sshll.u32 [#allocation2], 4
      %s25 = int_to_ptr.vmem [resolvable:$true] %s24
      %30 = dma.hbm_to_vmem [thread:$0]  %s3, 4096, %s25, [#allocation3], 128, 128, 8
    $region17: #{neural_network_forward.1} parent=1 // pred_fallthru
      _
    // Predicated region
    $region18: #{neural_network_forward.1} parent=1 // pred_check
      _
    $region19: #{neural_network_forward.1} parent=1 // pred_check_branch
      %32 = sbr.rel (0) target = $region21
    $region20: #{neural_network_forward.1} parent=1 // pred_region
      _
    $region21: #{neural_network_forward.1} parent=1 // pred_fallthru
      _
    // Predicated region
    $region22: #{neural_network_forward.1} parent=1 // pred_check
      _
    $region23: #{neural_network_forward.1} parent=1 // pred_check_branch
      %34 = sbr.rel (0) target = $region25
    $region24: #{neural_network_forward.1} parent=1 // pred_region
      _
    $region25: #{neural_network_forward.1} parent=1 // pred_fallthru
      _
    // Predicated region
    $region26: #{neural_network_forward.1} parent=1 // pred_check
      _
    $region27: #{neural_network_forward.1} parent=1 // pred_check_branch
      %36 = sbr.rel (0) target = $region29
    $region28: #{neural_network_forward.1} parent=1 // pred_region
      _
    $region29: #{neural_network_forward.1} parent=1 // pred_fallthru
      _
    // Predicated region
    $region30: #{neural_network_forward.1} parent=1 // pred_check
      _
    $region31: #{neural_network_forward.1} parent=1 // pred_check_branch
      %38 = sbr.rel (0) target = $region33
    $region32: #{neural_network_forward.1} parent=1 // pred_region
      %39 = dma.done [#allocation3], 4096
    $region33: #{neural_network_forward.1} parent=1 // pred_fallthru
      _
    %v40 = vld [vmem:[%s0] sm:$0xff]
    %v41 = vld [vmem:[%s0 + $0x8] sm:$0xff]
    %v42 = vld [vmem:[%s1] sm:$0xff]
    %v43 = vld [vmem:[%s1 + $0x8] sm:$0xff]
    %v44 = vld [vmem:[%s1 + $0x10] sm:$0xff]
    %v45 = vld [vmem:[%s1 + $0x18] sm:$0xff]
    %v46 = vld [vmem:[%s1 + $0x20] sm:$0xff]
    %v47 = vld [vmem:[%s1 + $0x28] sm:$0xff]
    %v48 = vld [vmem:[%s1 + $0x30] sm:$0xff]
    %v49 = vld [vmem:[%s1 + $0x38] sm:$0xff]
    %v50 = vld [vmem:[%s2] sm:$0x3]
    %v52 = vlaneseq
    %v53 = vshrl.u32 %v52, 7
    %v54 = vsub.s32 0, %v53
    %v55 = vrot.slane %v50, %v54
    %v56 = vlaneseq
    %v57 = vshrl.u32 %v56, 7
    %v58 = vsub.s32 1, %v57
    %v59 = vrot.slane %v50, %v58
    %vm62 = vcmask 261120
    %v64 = vsel %vm62, %v40, 0
    %v67 = vsel %vm62, %v41, 0
    %69 = vmatprep.subr.mxu0 0.0
    %70 = vmatpush1.msra.mxu0 0.0
    %71 = vmatprep.subr.mxu0 0.0
    %72 = vmatpush1.msra.mxu0 0.0
    %73 = vmatprep.subr.mxu0 0.0
    %74 = vmatpush1.msra.mxu0 0.0
    %75 = vmatprep.subr.mxu0 0.0
    %76 = vmatpush1.msra.mxu0 0.0
    %77 = vmatprep.subr.mxu0 0.0
    %78 = vmatpush1.msra.mxu0 0.0
    %79 = vmatprep.subr.mxu0 0.0
    %80 = vmatpush1.msra.mxu0 0.0
    %81 = vmatprep.subr.mxu0 0.0
    %82 = vmatpush1.msra.mxu0 0.0
    %83 = vmatprep.subr.mxu0 0.0
    %84 = vmatpush1.msra.mxu0 0.0
    %85 = vmatprep.subr.mxu0 0.0
    %86 = vmatpush1.msra.mxu0 0.0
    %87 = vmatprep.subr.mxu0 0.0
    %88 = vmatpush1.msra.mxu0 0.0
    %89 = vmatprep.subr.mxu0 0.0
    %90 = vmatpush1.msra.mxu0 0.0
    %91 = vmatprep.subr.mxu0 0.0
    %92 = vmatpush1.msra.mxu0 0.0
    %93 = vmatprep.subr.mxu0 %v49
    %94 = vmatpush1.msra.mxu0 %v48
    %95 = vmatprep.subr.mxu0 %v47
    %96 = vmatpush1.msra.mxu0 %v46
    %97 = vmatprep.subr.mxu0 %v45
    %98 = vmatpush1.msra.mxu0 %v44
    %99 = vmatprep.subr.mxu0 %v43
    %100 = vmatpush1.msra.mxu0 %v42
    %101 = vmatprep.subr.mxu0 0.0
    %102 = vmatpush2.msra.mxu0 0.0
    %103 = vmatprep.subr.mxu0 0.0
    %104 = vmatpush2.msra.mxu0 0.0
    %105 = vmatprep.subr.mxu0 0.0
    %106 = vmatpush2.msra.mxu0 0.0
    %107 = vmatprep.subr.mxu0 0.0
    %108 = vmatpush2.msra.mxu0 0.0
    %109 = vmatprep.subr.mxu0 0.0
    %110 = vmatpush2.msra.mxu0 0.0
    %111 = vmatprep.subr.mxu0 0.0
    %112 = vmatpush2.msra.mxu0 0.0
    %113 = vmatprep.subr.mxu0 0.0
    %114 = vmatpush2.msra.mxu0 0.0
    %115 = vmatprep.subr.mxu0 0.0
    %116 = vmatpush2.msra.mxu0 0.0
    %117 = vmatprep.subr.mxu0 0.0
    %118 = vmatpush2.msra.mxu0 0.0
    %119 = vmatprep.subr.mxu0 0.0
    %120 = vmatpush2.msra.mxu0 0.0
    %121 = vmatprep.subr.mxu0 0.0
    %122 = vmatpush2.msra.mxu0 0.0
    %123 = vmatprep.subr.mxu0 0.0
    %124 = vmatpush2.msra.mxu0 0.0
    %125 = vmatprep.subr.mxu0 0.0
    %126 = vmatpush2.msra.mxu0 0.0
    %127 = vmatprep.subr.mxu0 0.0
    %128 = vmatpush2.msra.mxu0 0.0
    %129 = vmatprep.subr.mxu0 0.0
    %130 = vmatpush2.msra.mxu0 0.0
    %131 = vmatprep.subr.mxu0 0.0
    %132 = vmatpush2.msra.mxu0 0.0
    %133 = vmatprep.mubr.f32.mxu0 0.0
    %134 = vmatmul.mubr.f32.gmra.mxu0 %v64
    %v135 = vpop.f32.mrf.mxu0
    %v136 = vadd.f32 %v55, %v135
    %v137 = vpop.f32.mrf.mxu0
    %v138 = vadd.f32 %v59, %v137
    %139 = vmatprep.mubr.f32.mxu0 0.0
    %140 = vmatmul.mubr.f32.gmra.mxu0 %v67
    %v141 = vpop.f32.mrf.mxu0
    %v142 = vadd.f32 %v55, %v141
    %v143 = vpop.f32.mrf.mxu0
    %v144 = vadd.f32 %v59, %v143
    %145 = vdwg.mxu0
    %v146 = vmax.f32 %v136, 0.0
    %v147 = vmax.f32 %v138, 0.0
    %v148 = vmax.f32 %v142, 0.0
    %v149 = vmax.f32 %v144, 0.0
    %v150 = vld [vmem:[#allocation2] sm:$0xff]
    %v151 = vld [vmem:[#allocation2 + $0x8] sm:$0xff]
    %v152 = vld [vmem:[#allocation2 + $0x10] sm:$0xff]
    %v153 = vld [vmem:[#allocation2 + $0x18] sm:$0xff]
    %v154 = vld [vmem:[#allocation2 + $0x20] sm:$0xff]
    %v155 = vld [vmem:[#allocation2 + $0x28] sm:$0xff]
    %v156 = vld [vmem:[#allocation2 + $0x30] sm:$0xff]
    %v157 = vld [vmem:[#allocation2 + $0x38] sm:$0xff]
    %v158 = vld [vmem:[#allocation2 + $0x40] sm:$0xff]
    %v159 = vld [vmem:[#allocation2 + $0x48] sm:$0xff]
    %v160 = vld [vmem:[#allocation2 + $0x50] sm:$0xff]
    %v161 = vld [vmem:[#allocation2 + $0x58] sm:$0xff]
    %v162 = vld [vmem:[#allocation2 + $0x60] sm:$0xff]
    %v163 = vld [vmem:[#allocation2 + $0x68] sm:$0xff]
    %v164 = vld [vmem:[#allocation2 + $0x70] sm:$0xff]
    %v165 = vld [vmem:[#allocation2 + $0x78] sm:$0xff]
    %v166 = vld [vmem:[#allocation2 + $0x80] sm:$0xff]
    %v167 = vld [vmem:[#allocation2 + $0x88] sm:$0xff]
    %v168 = vld [vmem:[#allocation2 + $0x90] sm:$0xff]
    %v169 = vld [vmem:[#allocation2 + $0x98] sm:$0xff]
    %v170 = vld [vmem:[#allocation2 + $0xa0] sm:$0xff]
    %v171 = vld [vmem:[#allocation2 + $0xa8] sm:$0xff]
    %v172 = vld [vmem:[#allocation2 + $0xb0] sm:$0xff]
    %v173 = vld [vmem:[#allocation2 + $0xb8] sm:$0xff]
    %v174 = vld [vmem:[#allocation2 + $0xc0] sm:$0xff]
    %v175 = vld [vmem:[#allocation2 + $0xc8] sm:$0xff]
    %v176 = vld [vmem:[#allocation2 + $0xd0] sm:$0xff]
    %v177 = vld [vmem:[#allocation2 + $0xd8] sm:$0xff]
    %v178 = vld [vmem:[#allocation2 + $0xe0] sm:$0xff]
    %v179 = vld [vmem:[#allocation2 + $0xe8] sm:$0xff]
    %v180 = vld [vmem:[#allocation2 + $0xf0] sm:$0xff]
    %v181 = vld [vmem:[#allocation2 + $0xf8] sm:$0xff]
    %v182 = vld [vmem:[%s4] sm:$0x1]
    %v184 = vlaneseq
    %v185 = vshrl.u32 %v184, 7
    %v186 = vsub.s32 0, %v185
    %v187 = vrot.slane %v182, %v186
    %189 = vmatprep.subr.mxu0 0.0
    %190 = vmatpush1.msra.mxu0 %v165
    %191 = vmatprep.subr.mxu0 0.0
    %192 = vmatpush1.msra.mxu0 %v164
    %193 = vmatprep.subr.mxu0 0.0
    %194 = vmatpush1.msra.mxu0 %v163
    %195 = vmatprep.subr.mxu0 0.0
    %196 = vmatpush1.msra.mxu0 %v162
    %197 = vmatprep.subr.mxu0 0.0
    %198 = vmatpush1.msra.mxu0 %v161
    %199 = vmatprep.subr.mxu0 0.0
    %200 = vmatpush1.msra.mxu0 %v160
    %201 = vmatprep.subr.mxu0 0.0
    %202 = vmatpush1.msra.mxu0 %v159
    %203 = vmatprep.subr.mxu0 0.0
    %204 = vmatpush1.msra.mxu0 %v158
    %205 = vmatprep.subr.mxu0 0.0
    %206 = vmatpush1.msra.mxu0 %v157
    %207 = vmatprep.subr.mxu0 0.0
    %208 = vmatpush1.msra.mxu0 %v156
    %209 = vmatprep.subr.mxu0 0.0
    %210 = vmatpush1.msra.mxu0 %v155
    %211 = vmatprep.subr.mxu0 0.0
    %212 = vmatpush1.msra.mxu0 %v154
    %213 = vmatprep.subr.mxu0 0.0
    %214 = vmatpush1.msra.mxu0 %v153
    %215 = vmatprep.subr.mxu0 0.0
    %216 = vmatpush1.msra.mxu0 %v152
    %217 = vmatprep.subr.mxu0 0.0
    %218 = vmatpush1.msra.mxu0 %v151
    %219 = vmatprep.subr.mxu0 0.0
    %220 = vmatpush1.msra.mxu0 %v150
    %221 = vmatprep.subr.mxu0 0.0
    %222 = vmatpush2.msra.mxu0 %v181
    %223 = vmatprep.subr.mxu0 0.0
    %224 = vmatpush2.msra.mxu0 %v180
    %225 = vmatprep.subr.mxu0 0.0
    %226 = vmatpush2.msra.mxu0 %v179
    %227 = vmatprep.subr.mxu0 0.0
    %228 = vmatpush2.msra.mxu0 %v178
    %229 = vmatprep.subr.mxu0 0.0
    %230 = vmatpush2.msra.mxu0 %v177
    %231 = vmatprep.subr.mxu0 0.0
    %232 = vmatpush2.msra.mxu0 %v176
    %233 = vmatprep.subr.mxu0 0.0
    %234 = vmatpush2.msra.mxu0 %v175
    %235 = vmatprep.subr.mxu0 0.0
    %236 = vmatpush2.msra.mxu0 %v174
    %237 = vmatprep.subr.mxu0 0.0
    %238 = vmatpush2.msra.mxu0 %v173
    %239 = vmatprep.subr.mxu0 0.0
    %240 = vmatpush2.msra.mxu0 %v172
    %241 = vmatprep.subr.mxu0 0.0
    %242 = vmatpush2.msra.mxu0 %v171
    %243 = vmatprep.subr.mxu0 0.0
    %244 = vmatpush2.msra.mxu0 %v170
    %245 = vmatprep.subr.mxu0 0.0
    %246 = vmatpush2.msra.mxu0 %v169
    %247 = vmatprep.subr.mxu0 0.0
    %248 = vmatpush2.msra.mxu0 %v168
    %249 = vmatprep.subr.mxu0 0.0
    %250 = vmatpush2.msra.mxu0 %v167
    %251 = vmatprep.subr.mxu0 0.0
    %252 = vmatpush2.msra.mxu0 %v166
    %253 = vmatprep.mubr.f32.mxu0 %v147
    %254 = vmatmul.mubr.f32.gmra.mxu0 %v146
    %v255 = vpop.f32.mrf.mxu0
    %v256 = vadd.f32 %v187, %v255
    %v257 = vpop.f32.mrf.mxu0
    %258 = vmatprep.mubr.f32.mxu0 %v149
    %259 = vmatmul.mubr.f32.gmra.mxu0 %v148
    %v260 = vpop.f32.mrf.mxu0
    %v261 = vadd.f32 %v187, %v260
    %v262 = vpop.f32.mrf.mxu0
    %263 = vdwg.mxu0
    %v264 = vmax.f32 %v256, 0.0
    %v265 = vmax.f32 %v261, 0.0
    %v266 = vld [vmem:[%s5] sm:$0xff]
    %v267 = vld [vmem:[%s5 + $0x8] sm:$0xff]
    %v268 = vld [vmem:[%s5 + $0x10] sm:$0xff]
    %v269 = vld [vmem:[%s5 + $0x18] sm:$0xff]
    %v270 = vld [vmem:[%s5 + $0x20] sm:$0xff]
    %v271 = vld [vmem:[%s5 + $0x28] sm:$0xff]
    %v272 = vld [vmem:[%s5 + $0x30] sm:$0xff]
    %v273 = vld [vmem:[%s5 + $0x38] sm:$0xff]
    %v274 = vld [vmem:[%s5 + $0x40] sm:$0xff]
    %v275 = vld [vmem:[%s5 + $0x48] sm:$0xff]
    %v276 = vld [vmem:[%s5 + $0x50] sm:$0xff]
    %v277 = vld [vmem:[%s5 + $0x58] sm:$0xff]
    %v278 = vld [vmem:[%s5 + $0x60] sm:$0xff]
    %v279 = vld [vmem:[%s5 + $0x68] sm:$0xff]
    %v280 = vld [vmem:[%s5 + $0x70] sm:$0xff]
    %v281 = vld [vmem:[%s5 + $0x78] sm:$0xff]
    %v282 = vld [vmem:[%s6] sm:$0x1]
    %v284 = vlaneseq
    %v285 = vshrl.u32 %v284, 7
    %v286 = vsub.s32 0, %v285
    %v287 = vrot.slane %v282, %v286
    %289 = vmatprep.subr.mxu0 0.0
    %290 = vmatpush1.msra.mxu0 %v281
    %291 = vmatprep.subr.mxu0 0.0
    %292 = vmatpush1.msra.mxu0 %v280
    %293 = vmatprep.subr.mxu0 0.0
    %294 = vmatpush1.msra.mxu0 %v279
    %295 = vmatprep.subr.mxu0 0.0
    %296 = vmatpush1.msra.mxu0 %v278
    %297 = vmatprep.subr.mxu0 0.0
    %298 = vmatpush1.msra.mxu0 %v277
    %299 = vmatprep.subr.mxu0 0.0
    %300 = vmatpush1.msra.mxu0 %v276
    %301 = vmatprep.subr.mxu0 0.0
    %302 = vmatpush1.msra.mxu0 %v275
    %303 = vmatprep.subr.mxu0 0.0
    %304 = vmatpush1.msra.mxu0 %v274
    %305 = vmatprep.subr.mxu0 0.0
    %306 = vmatpush1.msra.mxu0 %v273
    %307 = vmatprep.subr.mxu0 0.0
    %308 = vmatpush1.msra.mxu0 %v272
    %309 = vmatprep.subr.mxu0 0.0
    %310 = vmatpush1.msra.mxu0 %v271
    %311 = vmatprep.subr.mxu0 0.0
    %312 = vmatpush1.msra.mxu0 %v270
    %313 = vmatprep.subr.mxu0 0.0
    %314 = vmatpush1.msra.mxu0 %v269
    %315 = vmatprep.subr.mxu0 0.0
    %316 = vmatpush1.msra.mxu0 %v268
    %317 = vmatprep.subr.mxu0 0.0
    %318 = vmatpush1.msra.mxu0 %v267
    %319 = vmatprep.subr.mxu0 0.0
    %320 = vmatpush1.msra.mxu0 %v266
    %321 = vmatprep.subr.mxu0 0.0
    %322 = vmatpush2.msra.mxu0 0.0
    %323 = vmatprep.subr.mxu0 0.0
    %324 = vmatpush2.msra.mxu0 0.0
    %325 = vmatprep.subr.mxu0 0.0
    %326 = vmatpush2.msra.mxu0 0.0
    %327 = vmatprep.subr.mxu0 0.0
    %328 = vmatpush2.msra.mxu0 0.0
    %329 = vmatprep.subr.mxu0 0.0
    %330 = vmatpush2.msra.mxu0 0.0
    %331 = vmatprep.subr.mxu0 0.0
    %332 = vmatpush2.msra.mxu0 0.0
    %333 = vmatprep.subr.mxu0 0.0
    %334 = vmatpush2.msra.mxu0 0.0
    %335 = vmatprep.subr.mxu0 0.0
    %336 = vmatpush2.msra.mxu0 0.0
    %337 = vmatprep.subr.mxu0 0.0
    %338 = vmatpush2.msra.mxu0 0.0
    %339 = vmatprep.subr.mxu0 0.0
    %340 = vmatpush2.msra.mxu0 0.0
    %341 = vmatprep.subr.mxu0 0.0
    %342 = vmatpush2.msra.mxu0 0.0
    %343 = vmatprep.subr.mxu0 0.0
    %344 = vmatpush2.msra.mxu0 0.0
    %345 = vmatprep.subr.mxu0 0.0
    %346 = vmatpush2.msra.mxu0 0.0
    %347 = vmatprep.subr.mxu0 0.0
    %348 = vmatpush2.msra.mxu0 0.0
    %349 = vmatprep.subr.mxu0 0.0
    %350 = vmatpush2.msra.mxu0 0.0
    %351 = vmatprep.subr.mxu0 0.0
    %352 = vmatpush2.msra.mxu0 0.0
    %353 = vmatprep.mubr.f32.mxu0 0.0
    %354 = vmatmul.mubr.f32.gmra.mxu0 %v264
    %v355 = vpop.f32.mrf.mxu0
    %v356 = vadd.f32 %v287, %v355
    %v357 = vpop.f32.mrf.mxu0
    %358 = vmatprep.mubr.f32.mxu0 0.0
    %359 = vmatmul.mubr.f32.gmra.mxu0 %v265
    %v360 = vpop.f32.mrf.mxu0
    %v361 = vadd.f32 %v287, %v360
    %v362 = vpop.f32.mrf.mxu0
    %363 = vdwg.mxu0
    %vm364 = vcmask 23552
    %365 = vst.msk [vmem:[%s7] sm:$0xff] %vm364, %v356
    %366 = vst.msk [vmem:[%s7 + $0x8] sm:$0xff] %vm364, %v361
    // Predicated region
    $region34: #{neural_network_forward.1} parent=1 // pred_check
      _
    $region35: #{neural_network_forward.1} parent=1 // pred_check_branch
      %368 = sbr.rel (0) target = $region37
    $region36: #{neural_network_forward.1} parent=1 // pred_region
      _
    $region37: #{neural_network_forward.1} parent=1 // pred_fallthru
      _
    // Predicated region
    $region38: #{neural_network_forward.1} parent=1 // pred_check
      _
    $region39: #{neural_network_forward.1} parent=1 // pred_check_branch
      %370 = sbr.rel (0) target = $region41
    $region40: #{neural_network_forward.1} parent=1 // pred_region
      _
    $region41: #{neural_network_forward.1} parent=1 // pred_fallthru
      _
    %371 = vsyncpa [#allocation3], 1

</llo_original>
